<compile_context>
chip_gen: v6e
topology: v6e:2x2x1
jax: 0.10.0
libtpu: 0.0.40
codegen_flags: <defaults>
</compile_context>

<pallas_src>
from functools import partial

import jax
import jax.numpy as jnp
from jax.experimental import pallas as pl
from jax.experimental.pallas import tpu as pltpu


def rnn_kernel(ids_ref, len_ref, emb_ref, wih_ref, whh_ref, b_ref,
               wfc_ref, bfc_ref, out_ref):
    """Fused embed + RNN recurrence + FC head (single invocation, no grid).

    ids_ref: (T*B, 1) i32   time-major token ids (row t*B + b)
    len_ref: (B, 1)   i32   sequence lengths (in [1, T], sorted descending)
    emb_ref: (Vp, Ep) bf16  embedding table (zero-padded to 128-multiples)
    wih_ref: (Ep, H)  bf16  input->hidden weight (pre-transposed, rows padded)
    whh_ref: (H, H)   bf16  hidden->hidden weight (pre-transposed)
    b_ref:   (1, H)   f32   b_ih + b_hh
    wfc_ref: (H, Op)  bf16  FC weight (pre-transposed, cols zero-padded)
    bfc_ref: (1, Op)  f32   FC bias (zero-padded)
    out_ref: (B, Op)  f32   FC output (caller slices [:, :output_dim])
    """
    TB = ids_ref.shape[0]
    B = len_ref.shape[0]
    T = TB // B
    Vp = emb_ref.shape[0]
    H = whh_ref.shape[0]

    # (1) Fused embedding lookup: exact one-hot row-select on the MXU (0/1 bf16
    #     weights selecting bf16 rows, f32 accumulation -> exact), then the input
    #     projection for ALL timesteps in one pass with the bias folded in.
    #     None of this is on the serial recurrence critical path.
    iota_v = jax.lax.broadcasted_iota(jnp.int32, (TB, Vp), 1)
    onehot = jnp.where(ids_ref[...] == iota_v, 1.0, 0.0).astype(jnp.bfloat16)
    x_sel = jnp.dot(onehot, emb_ref[...],
                    preferred_element_type=jnp.float32).astype(jnp.bfloat16)
    xproj = jnp.dot(x_sel, wih_ref[...],
                    preferred_element_type=jnp.float32) + b_ref[...]   # (TB, H) f32 value

    # (2) Loop-invariant hoists: lengths loaded once; all T masks precomputed so
    #     the per-step body has no compare / broadcast on the serial chain.
    len_v = len_ref[...]                       # (B, 1) i32
    masks = [len_v > t for t in range(T)]      # T x (B, 1) bool

    # (3) Fully-unrolled recurrence; hidden state lives in vregs (loop carry).
    #     tanh / add / select stay f32 (v5e-safe); only the MXU operand is bf16.
    h = jnp.zeros((B, H), jnp.float32)
    for t in range(T):
        pre = xproj[t * B:(t + 1) * B, :] + jnp.dot(
            h.astype(jnp.bfloat16), whh_ref[...],
            preferred_element_type=jnp.float32)
        # pack_padded_sequence semantics: freeze rows once t >= lengths[b].
        h = jnp.where(masks[t], jnp.tanh(pre), h)

    # (4) FC head: bf16 MXU operands, f32 accumulation.  Op is lane-padded to a
    #     multiple of 128 so this single store is an unmasked full-lane vst.
    out_ref[...] = jnp.dot(h.astype(jnp.bfloat16), wfc_ref[...],
                           preferred_element_type=jnp.float32) + bfc_ref[...]


def _round_up(n, m):
    return ((n + m - 1) // m) * m


def pack_params(params):
    """One-time padding / bf16 cast of weights into the kernel layout."""
    V, E = params["embedding"].shape
    H = params["w_hh"].shape[0]
    O = params["w_fc"].shape[1]
    Vp, Ep, Op = _round_up(V, 128), _round_up(E, 128), _round_up(O, 128)
    return {
        "emb": jnp.pad(params["embedding"],
                       ((0, Vp - V), (0, Ep - E))).astype(jnp.bfloat16),
        "w_ih": jnp.pad(params["w_ih"], ((0, Ep - E), (0, 0))).astype(jnp.bfloat16),
        "w_hh": params["w_hh"].astype(jnp.bfloat16),
        "bias": (params["b_ih"] + params["b_hh"]).reshape(1, H).astype(jnp.float32),
        "w_fc": jnp.pad(params["w_fc"], ((0, 0), (0, Op - O))).astype(jnp.bfloat16),
        "b_fc": jnp.pad(params["b_fc"], (0, Op - O)).reshape(1, Op).astype(jnp.float32),
    }


@partial(jax.jit, static_argnames=("output_dim",))
def simple_rnn_forward(text, lengths, packed, output_dim):
    """text: (B, T) int32 token ids; lengths: (B,) int32 (sorted descending)."""
    B, T = text.shape
    Op = packed["b_fc"].shape[1]

    # Only remaining glue: a 64-byte int32 relayout + lengths reshape.  The float
    # embedding gather / transpose / pad / cast are fused into the kernel.
    ids_tm = text.astype(jnp.int32).T.reshape(T * B, 1)      # row t*B + b
    lengths_2d = lengths.reshape(B, 1).astype(jnp.int32)

    out_p = pl.pallas_call(
        rnn_kernel,
        out_shape=jax.ShapeDtypeStruct((B, Op), jnp.float32),
        in_specs=[pl.BlockSpec(memory_space=pltpu.MemorySpace.VMEM)] * 8,
        out_specs=pl.BlockSpec(memory_space=pltpu.MemorySpace.VMEM),
    )(ids_tm, lengths_2d, packed["emb"], packed["w_ih"], packed["w_hh"],
      packed["bias"], packed["w_fc"], packed["b_fc"])

    return out_p[:, :output_dim]


def reference_forward(text, lengths, params, mixed=False):
    """Pure-JAX reference.  mixed=False: exact f32 PyTorch semantics.
    mixed=True: mirrors the kernel's bf16-operand / f32-accumulation numerics."""
    emb = params["embedding"][text].astype(jnp.float32)    # (B, T, E)
    B, T, E = emb.shape
    in_dt = jnp.bfloat16 if mixed else jnp.float32
    w_ih = params["w_ih"].astype(in_dt)
    w_hh = params["w_hh"].astype(in_dt)
    w_fc = params["w_fc"].astype(in_dt)
    bias = (params["b_ih"] + params["b_hh"]).astype(jnp.float32)

    x_tm = jnp.transpose(emb, (1, 0, 2)).astype(in_dt)     # (T, B, E)
    xproj = jnp.einsum("tbe,eh->tbh", x_tm, w_ih,
                       preferred_element_type=jnp.float32) + bias

    def step(h, inp):
        xp_t, t = inp
        h_new = jnp.tanh(xp_t + jnp.dot(h.astype(in_dt), w_hh,
                                        preferred_element_type=jnp.float32))
        h = jnp.where((lengths > t)[:, None], h_new, h)
        return h, None

    h0 = jnp.zeros((B, params["w_hh"].shape[0]), jnp.float32)
    h, _ = jax.lax.scan(step, h0, (xproj, jnp.arange(T)))
    return jnp.dot(h.astype(in_dt), w_fc,
                   preferred_element_type=jnp.float32) + params["b_fc"][None, :]


def init_params(key, vocab_size, embedding_dim, hidden_dim, output_dim):
    k_emb, k_wih, k_whh, k_bih, k_bhh, k_wfc, k_bfc = jax.random.split(key, 7)
    bound_rnn = 1.0 / jnp.sqrt(hidden_dim)
    bound_fc = 1.0 / jnp.sqrt(hidden_dim)
    return {
        # nn.Embedding default: N(0, 1)
        "embedding": jax.random.normal(k_emb, (vocab_size, embedding_dim),
                                       jnp.float32),
        # nn.RNN default: U(-1/sqrt(H), 1/sqrt(H)); stored pre-transposed (E,H)/(H,H)
        "w_ih": jax.random.uniform(k_wih, (embedding_dim, hidden_dim),
                                   jnp.float32, -bound_rnn, bound_rnn),
        "w_hh": jax.random.uniform(k_whh, (hidden_dim, hidden_dim),
                                   jnp.float32, -bound_rnn, bound_rnn),
        "b_ih": jax.random.uniform(k_bih, (hidden_dim,), jnp.float32,
                                   -bound_rnn, bound_rnn),
        "b_hh": jax.random.uniform(k_bhh, (hidden_dim,), jnp.float32,
                                   -bound_rnn, bound_rnn),
        # nn.Linear default: U(-1/sqrt(in), 1/sqrt(in)); stored pre-transposed (H,O)
        "w_fc": jax.random.uniform(k_wfc, (hidden_dim, output_dim),
                                   jnp.float32, -bound_fc, bound_fc),
        "b_fc": jax.random.uniform(k_bfc, (output_dim,), jnp.float32,
                                   -bound_fc, bound_fc),
    }


if __name__ == "__main__":
    vocab_size = 50          # input_dim = len(vocab)
    embedding_dim = 100
    hidden_dim = 256
    output_dim = 1
    B, T = 2, 8

    key = jax.random.PRNGKey(0)
    k_params, k_text = jax.random.split(key)
    params = init_params(k_params, vocab_size, embedding_dim, hidden_dim,
                         output_dim)
    packed = pack_params(params)   # one-time weight layout prep (not per step)

    text = jax.random.randint(k_text, (B, T), 0, vocab_size, dtype=jnp.int32)
    lengths = jnp.array([8, 5], dtype=jnp.int32)  # sorted descending (enforce_sorted=True)

    out = jax.block_until_ready(
        simple_rnn_forward(text, lengths, packed, output_dim=output_dim))
    assert out.shape == (B, output_dim)

    # Tight check against a reference that mirrors the kernel's mixed precision
    # (bf16 matmul operands, f32 accumulation) -> verifies kernel logic.
    ref_mixed = jax.block_until_ready(
        reference_forward(text, lengths, params, mixed=True))
    assert jnp.allclose(out, ref_mixed, atol=2e-3, rtol=2e-3), (out, ref_mixed)

    # Looser check against the pure-f32 PyTorch-equivalent forward; the only
    # deviation is the bf16 weight/activation quantization in the matmuls.
    ref_f32 = jax.block_until_ready(
        reference_forward(text, lengths, params, mixed=False))
    assert jnp.allclose(out, ref_f32, atol=5e-2, rtol=5e-2), (out, ref_f32)

    print("KERNEL_OK")
</pallas_src>

<mosaic_0001>
module attributes {stable_mosaic.version = 11 : i64} {
  func.func @rnn_kernel(%arg0: memref<16x1xi32, #tpu.memory_space<vmem>>, %arg1: memref<2x1xi32, #tpu.memory_space<vmem>>, %arg2: memref<128x128xbf16, #tpu.memory_space<vmem>>, %arg3: memref<128x256xbf16, #tpu.memory_space<vmem>>, %arg4: memref<256x256xbf16, #tpu.memory_space<vmem>>, %arg5: memref<1x256xf32, #tpu.memory_space<vmem>>, %arg6: memref<256x128xbf16, #tpu.memory_space<vmem>>, %arg7: memref<1x128xf32, #tpu.memory_space<vmem>>, %arg8: memref<2x128xf32, #tpu.memory_space<vmem>>) attributes {dimension_semantics = [], scalar_prefetch = 0 : i64, scratch_operands = 0 : i64, tpu.core_type = #tpu.core_type<tc>} {
    %0 = tpu.iota {dimensions = array<i32: 1>} : vector<16x128xi32>
    %c0 = arith.constant 0 : index
    %c0_0 = arith.constant 0 : index
    %1 = vector.load %arg0[%c0, %c0_0] : memref<16x1xi32, #tpu.memory_space<vmem>>, vector<16x1xi32>
    %2 = vector.broadcast %1 : vector<16x1xi32> to vector<16x128xi32>
    %3 = arith.cmpi eq, %2, %0 : vector<16x128xi32>
    %cst = arith.constant 1.000000e+00 : f32
    %cst_1 = arith.constant 0.000000e+00 : f32
    %4 = vector.broadcast %cst : f32 to vector<16x128xf32>
    %5 = vector.broadcast %cst_1 : f32 to vector<16x128xf32>
    %6 = arith.select %3, %4, %5 : vector<16x128xi1>, vector<16x128xf32>
    %7 = arith.truncf %6 : vector<16x128xf32> to vector<16x128xbf16>
    %c0_2 = arith.constant 0 : index
    %c0_3 = arith.constant 0 : index
    %8 = vector.load %arg2[%c0_2, %c0_3] : memref<128x128xbf16, #tpu.memory_space<vmem>>, vector<128x128xbf16>
    %cst_4 = arith.constant dense<0.000000e+00> : vector<16x128xf32>
    %9 = tpu.matmul %7, %8, %cst_4 {dimension_numbers = #tpu.dot_dimension_numbers<[1], [0], [0], [1], [0, 0, 1, 1], [], []>} : vector<16x128xbf16>, vector<128x128xbf16>, vector<16x128xf32> -> vector<16x128xf32>
    %10 = arith.truncf %9 : vector<16x128xf32> to vector<16x128xbf16>
    %c0_5 = arith.constant 0 : index
    %c0_6 = arith.constant 0 : index
    %11 = vector.load %arg3[%c0_5, %c0_6] : memref<128x256xbf16, #tpu.memory_space<vmem>>, vector<128x256xbf16>
    %cst_7 = arith.constant dense<0.000000e+00> : vector<16x256xf32>
    %12 = tpu.matmul %10, %11, %cst_7 {dimension_numbers = #tpu.dot_dimension_numbers<[1], [0], [0], [1], [0, 0, 1, 1], [], []>} : vector<16x128xbf16>, vector<128x256xbf16>, vector<16x256xf32> -> vector<16x256xf32>
    %c0_8 = arith.constant 0 : index
    %c0_9 = arith.constant 0 : index
    %13 = vector.load %arg5[%c0_8, %c0_9] : memref<1x256xf32, #tpu.memory_space<vmem>>, vector<1x256xf32>
    %14 = vector.broadcast %13 : vector<1x256xf32> to vector<16x256xf32>
    %15 = arith.addf %12, %14 : vector<16x256xf32>
    %c0_10 = arith.constant 0 : index
    %c0_11 = arith.constant 0 : index
    %16 = vector.load %arg1[%c0_10, %c0_11] : memref<2x1xi32, #tpu.memory_space<vmem>>, vector<2x1xi32>
    %c0_i32 = arith.constant 0 : i32
    %17 = vector.broadcast %c0_i32 : i32 to vector<2x1xi32>
    %18 = arith.cmpi sgt, %16, %17 : vector<2x1xi32>
    %c1_i32 = arith.constant 1 : i32
    %19 = vector.broadcast %c1_i32 : i32 to vector<2x1xi32>
    %20 = arith.cmpi sgt, %16, %19 : vector<2x1xi32>
    %c2_i32 = arith.constant 2 : i32
    %21 = vector.broadcast %c2_i32 : i32 to vector<2x1xi32>
    %22 = arith.cmpi sgt, %16, %21 : vector<2x1xi32>
    %c3_i32 = arith.constant 3 : i32
    %23 = vector.broadcast %c3_i32 : i32 to vector<2x1xi32>
    %24 = arith.cmpi sgt, %16, %23 : vector<2x1xi32>
    %c4_i32 = arith.constant 4 : i32
    %25 = vector.broadcast %c4_i32 : i32 to vector<2x1xi32>
    %26 = arith.cmpi sgt, %16, %25 : vector<2x1xi32>
    %c5_i32 = arith.constant 5 : i32
    %27 = vector.broadcast %c5_i32 : i32 to vector<2x1xi32>
    %28 = arith.cmpi sgt, %16, %27 : vector<2x1xi32>
    %c6_i32 = arith.constant 6 : i32
    %29 = vector.broadcast %c6_i32 : i32 to vector<2x1xi32>
    %30 = arith.cmpi sgt, %16, %29 : vector<2x1xi32>
    %c7_i32 = arith.constant 7 : i32
    %31 = vector.broadcast %c7_i32 : i32 to vector<2x1xi32>
    %32 = arith.cmpi sgt, %16, %31 : vector<2x1xi32>
    %cst_12 = arith.constant 0.000000e+00 : f32
    %33 = vector.broadcast %cst_12 : f32 to vector<2x256xf32>
    %34 = vector.extract_strided_slice %15 {offsets = [0, 0], sizes = [2, 256], strides = [1, 1]} : vector<16x256xf32> to vector<2x256xf32>
    %35 = arith.truncf %33 : vector<2x256xf32> to vector<2x256xbf16>
    %c0_13 = arith.constant 0 : index
    %c0_14 = arith.constant 0 : index
    %36 = vector.load %arg4[%c0_13, %c0_14] : memref<256x256xbf16, #tpu.memory_space<vmem>>, vector<256x256xbf16>
    %cst_15 = arith.constant dense<0.000000e+00> : vector<2x256xf32>
    %37 = tpu.matmul %35, %36, %cst_15 {dimension_numbers = #tpu.dot_dimension_numbers<[1], [0], [0], [1], [0, 0, 1, 1], [], []>} : vector<2x256xbf16>, vector<256x256xbf16>, vector<2x256xf32> -> vector<2x256xf32>
    %38 = arith.addf %34, %37 : vector<2x256xf32>
    %39 = math.tanh %38 : vector<2x256xf32>
    %40 = vector.shape_cast %18 : vector<2x1xi1> to vector<2x1xi1>
    %41 = vector.broadcast %40 : vector<2x1xi1> to vector<2x256xi1>
    %42 = arith.select %41, %39, %33 : vector<2x256xi1>, vector<2x256xf32>
    %43 = vector.extract_strided_slice %15 {offsets = [2, 0], sizes = [2, 256], strides = [1, 1]} : vector<16x256xf32> to vector<2x256xf32>
    %44 = arith.truncf %42 : vector<2x256xf32> to vector<2x256xbf16>
    %c0_16 = arith.constant 0 : index
    %c0_17 = arith.constant 0 : index
    %45 = vector.load %arg4[%c0_16, %c0_17] : memref<256x256xbf16, #tpu.memory_space<vmem>>, vector<256x256xbf16>
    %cst_18 = arith.constant dense<0.000000e+00> : vector<2x256xf32>
    %46 = tpu.matmul %44, %45, %cst_18 {dimension_numbers = #tpu.dot_dimension_numbers<[1], [0], [0], [1], [0, 0, 1, 1], [], []>} : vector<2x256xbf16>, vector<256x256xbf16>, vector<2x256xf32> -> vector<2x256xf32>
    %47 = arith.addf %43, %46 : vector<2x256xf32>
    %48 = math.tanh %47 : vector<2x256xf32>
    %49 = vector.shape_cast %20 : vector<2x1xi1> to vector<2x1xi1>
    %50 = vector.broadcast %49 : vector<2x1xi1> to vector<2x256xi1>
    %51 = arith.select %50, %48, %42 : vector<2x256xi1>, vector<2x256xf32>
    %52 = vector.extract_strided_slice %15 {offsets = [4, 0], sizes = [2, 256], strides = [1, 1]} : vector<16x256xf32> to vector<2x256xf32>
    %53 = arith.truncf %51 : vector<2x256xf32> to vector<2x256xbf16>
    %c0_19 = arith.constant 0 : index
    %c0_20 = arith.constant 0 : index
    %54 = vector.load %arg4[%c0_19, %c0_20] : memref<256x256xbf16, #tpu.memory_space<vmem>>, vector<256x256xbf16>
    %cst_21 = arith.constant dense<0.000000e+00> : vector<2x256xf32>
    %55 = tpu.matmul %53, %54, %cst_21 {dimension_numbers = #tpu.dot_dimension_numbers<[1], [0], [0], [1], [0, 0, 1, 1], [], []>} : vector<2x256xbf16>, vector<256x256xbf16>, vector<2x256xf32> -> vector<2x256xf32>
    %56 = arith.addf %52, %55 : vector<2x256xf32>
    %57 = math.tanh %56 : vector<2x256xf32>
    %58 = vector.shape_cast %22 : vector<2x1xi1> to vector<2x1xi1>
    %59 = vector.broadcast %58 : vector<2x1xi1> to vector<2x256xi1>
    %60 = arith.select %59, %57, %51 : vector<2x256xi1>, vector<2x256xf32>
    %61 = vector.extract_strided_slice %15 {offsets = [6, 0], sizes = [2, 256], strides = [1, 1]} : vector<16x256xf32> to vector<2x256xf32>
    %62 = arith.truncf %60 : vector<2x256xf32> to vector<2x256xbf16>
    %c0_22 = arith.constant 0 : index
    %c0_23 = arith.constant 0 : index
    %63 = vector.load %arg4[%c0_22, %c0_23] : memref<256x256xbf16, #tpu.memory_space<vmem>>, vector<256x256xbf16>
    %cst_24 = arith.constant dense<0.000000e+00> : vector<2x256xf32>
    %64 = tpu.matmul %62, %63, %cst_24 {dimension_numbers = #tpu.dot_dimension_numbers<[1], [0], [0], [1], [0, 0, 1, 1], [], []>} : vector<2x256xbf16>, vector<256x256xbf16>, vector<2x256xf32> -> vector<2x256xf32>
    %65 = arith.addf %61, %64 : vector<2x256xf32>
    %66 = math.tanh %65 : vector<2x256xf32>
    %67 = vector.shape_cast %24 : vector<2x1xi1> to vector<2x1xi1>
    %68 = vector.broadcast %67 : vector<2x1xi1> to vector<2x256xi1>
    %69 = arith.select %68, %66, %60 : vector<2x256xi1>, vector<2x256xf32>
    %70 = vector.extract_strided_slice %15 {offsets = [8, 0], sizes = [2, 256], strides = [1, 1]} : vector<16x256xf32> to vector<2x256xf32>
    %71 = arith.truncf %69 : vector<2x256xf32> to vector<2x256xbf16>
    %c0_25 = arith.constant 0 : index
    %c0_26 = arith.constant 0 : index
    %72 = vector.load %arg4[%c0_25, %c0_26] : memref<256x256xbf16, #tpu.memory_space<vmem>>, vector<256x256xbf16>
    %cst_27 = arith.constant dense<0.000000e+00> : vector<2x256xf32>
    %73 = tpu.matmul %71, %72, %cst_27 {dimension_numbers = #tpu.dot_dimension_numbers<[1], [0], [0], [1], [0, 0, 1, 1], [], []>} : vector<2x256xbf16>, vector<256x256xbf16>, vector<2x256xf32> -> vector<2x256xf32>
    %74 = arith.addf %70, %73 : vector<2x256xf32>
    %75 = math.tanh %74 : vector<2x256xf32>
    %76 = vector.shape_cast %26 : vector<2x1xi1> to vector<2x1xi1>
    %77 = vector.broadcast %76 : vector<2x1xi1> to vector<2x256xi1>
    %78 = arith.select %77, %75, %69 : vector<2x256xi1>, vector<2x256xf32>
    %79 = vector.extract_strided_slice %15 {offsets = [10, 0], sizes = [2, 256], strides = [1, 1]} : vector<16x256xf32> to vector<2x256xf32>
    %80 = arith.truncf %78 : vector<2x256xf32> to vector<2x256xbf16>
    %c0_28 = arith.constant 0 : index
    %c0_29 = arith.constant 0 : index
    %81 = vector.load %arg4[%c0_28, %c0_29] : memref<256x256xbf16, #tpu.memory_space<vmem>>, vector<256x256xbf16>
    %cst_30 = arith.constant dense<0.000000e+00> : vector<2x256xf32>
    %82 = tpu.matmul %80, %81, %cst_30 {dimension_numbers = #tpu.dot_dimension_numbers<[1], [0], [0], [1], [0, 0, 1, 1], [], []>} : vector<2x256xbf16>, vector<256x256xbf16>, vector<2x256xf32> -> vector<2x256xf32>
    %83 = arith.addf %79, %82 : vector<2x256xf32>
    %84 = math.tanh %83 : vector<2x256xf32>
    %85 = vector.shape_cast %28 : vector<2x1xi1> to vector<2x1xi1>
    %86 = vector.broadcast %85 : vector<2x1xi1> to vector<2x256xi1>
    %87 = arith.select %86, %84, %78 : vector<2x256xi1>, vector<2x256xf32>
    %88 = vector.extract_strided_slice %15 {offsets = [12, 0], sizes = [2, 256], strides = [1, 1]} : vector<16x256xf32> to vector<2x256xf32>
    %89 = arith.truncf %87 : vector<2x256xf32> to vector<2x256xbf16>
    %c0_31 = arith.constant 0 : index
    %c0_32 = arith.constant 0 : index
    %90 = vector.load %arg4[%c0_31, %c0_32] : memref<256x256xbf16, #tpu.memory_space<vmem>>, vector<256x256xbf16>
    %cst_33 = arith.constant dense<0.000000e+00> : vector<2x256xf32>
    %91 = tpu.matmul %89, %90, %cst_33 {dimension_numbers = #tpu.dot_dimension_numbers<[1], [0], [0], [1], [0, 0, 1, 1], [], []>} : vector<2x256xbf16>, vector<256x256xbf16>, vector<2x256xf32> -> vector<2x256xf32>
    %92 = arith.addf %88, %91 : vector<2x256xf32>
    %93 = math.tanh %92 : vector<2x256xf32>
    %94 = vector.shape_cast %30 : vector<2x1xi1> to vector<2x1xi1>
    %95 = vector.broadcast %94 : vector<2x1xi1> to vector<2x256xi1>
    %96 = arith.select %95, %93, %87 : vector<2x256xi1>, vector<2x256xf32>
    %97 = vector.extract_strided_slice %15 {offsets = [14, 0], sizes = [2, 256], strides = [1, 1]} : vector<16x256xf32> to vector<2x256xf32>
    %98 = arith.truncf %96 : vector<2x256xf32> to vector<2x256xbf16>
    %c0_34 = arith.constant 0 : index
    %c0_35 = arith.constant 0 : index
    %99 = vector.load %arg4[%c0_34, %c0_35] : memref<256x256xbf16, #tpu.memory_space<vmem>>, vector<256x256xbf16>
    %cst_36 = arith.constant dense<0.000000e+00> : vector<2x256xf32>
    %100 = tpu.matmul %98, %99, %cst_36 {dimension_numbers = #tpu.dot_dimension_numbers<[1], [0], [0], [1], [0, 0, 1, 1], [], []>} : vector<2x256xbf16>, vector<256x256xbf16>, vector<2x256xf32> -> vector<2x256xf32>
    %101 = arith.addf %97, %100 : vector<2x256xf32>
    %102 = math.tanh %101 : vector<2x256xf32>
    %103 = vector.shape_cast %32 : vector<2x1xi1> to vector<2x1xi1>
    %104 = vector.broadcast %103 : vector<2x1xi1> to vector<2x256xi1>
    %105 = arith.select %104, %102, %96 : vector<2x256xi1>, vector<2x256xf32>
    %106 = arith.truncf %105 : vector<2x256xf32> to vector<2x256xbf16>
    %c0_37 = arith.constant 0 : index
    %c0_38 = arith.constant 0 : index
    %107 = vector.load %arg6[%c0_37, %c0_38] : memref<256x128xbf16, #tpu.memory_space<vmem>>, vector<256x128xbf16>
    %cst_39 = arith.constant dense<0.000000e+00> : vector<2x128xf32>
    %108 = tpu.matmul %106, %107, %cst_39 {dimension_numbers = #tpu.dot_dimension_numbers<[1], [0], [0], [1], [0, 0, 1, 1], [], []>} : vector<2x256xbf16>, vector<256x128xbf16>, vector<2x128xf32> -> vector<2x128xf32>
    %c0_40 = arith.constant 0 : index
    %c0_41 = arith.constant 0 : index
    %109 = vector.load %arg7[%c0_40, %c0_41] : memref<1x128xf32, #tpu.memory_space<vmem>>, vector<1x128xf32>
    %110 = vector.broadcast %109 : vector<1x128xf32> to vector<2x128xf32>
    %111 = arith.addf %108, %110 : vector<2x128xf32>
    %c0_42 = arith.constant 0 : index
    %c0_43 = arith.constant 0 : index
    %112 = vector.load %arg8[%c0_42, %c0_43] : memref<2x128xf32, #tpu.memory_space<vmem>>, vector<2x128xf32>
    tpu.vector_store %arg8[%c0_42, %c0_43], %111 {strides = array<i32>} : memref<2x128xf32, #tpu.memory_space<vmem>>, vector<2x128xf32>,
    return
  }
}

</mosaic_0001>

<llo_original>
// kernel: simple_rnn_forward.1
$region0: #{simple_rnn_forward.1}
  #allocation0 [shape = 'u32[]', space=smem, size = 0x4, offset = 0x4, fixed_abs, tag = 'smem constant byte address 0x4 - core index']
  #allocation1 [shape = 'u32[144,128]{1,0:T(1,128)}', space=vmem, size = 0x12000, scoped, tag = 'internal scratch']
  %s0 = inlined_call_operand.vmem [shape: s32[16,1], index: 0, kind: input, shape index: {}]
  %s1 = inlined_call_operand.vmem [shape: s32[2,1], index: 1, kind: input, shape index: {}]
  %s2 = inlined_call_operand.hbm [shape: bf16[128,128], index: 2, kind: input, shape index: {}]
  %s3 = inlined_call_operand.hbm [shape: bf16[128,256], index: 3, kind: input, shape index: {}]
  %s4 = inlined_call_operand.hbm [shape: bf16[256,256], index: 4, kind: input, shape index: {}]
  %s5 = inlined_call_operand.vmem [shape: f32[1,256], index: 5, kind: input, shape index: {}]
  %s6 = inlined_call_operand.hbm [shape: bf16[256,128], index: 6, kind: input, shape index: {}]
  %s7 = inlined_call_operand.vmem [shape: f32[1,128], index: 7, kind: input, shape index: {}]
  %s8 = inlined_call_operand.vmem [shape: f32[2,128], index: 8, kind: output, shape index: {}]
  %s9 = sld [smem:[#allocation0]]
  $region58: #{simple_rnn_forward.1} parent=0
    _
  %s11 = ssub.s32 1, %s9
  %s12 = scalar_select 0, %s11, %s9
  $region1: #{simple_rnn_forward.1} parent=0
    #allocation2 [shape = 'u8[32768]{0}', space=vmem, size = 0x8000, scoped, tag = 'input window, operand 2, single buffered']
    #allocation3 [shape = 's32[1]{0}', space=sflag, size = 0x4, scoped, tag = 'scoped memory for simple_rnn_forward.1']
    #allocation4 [shape = 'u8[65536]{0}', space=vmem, size = 0x10000, scoped, tag = 'input window, operand 3, single buffered']
    #allocation5 [shape = 's32[1]{0}', space=sflag, size = 0x4, scoped, tag = 'scoped memory for simple_rnn_forward.1']
    #allocation6 [shape = 'u8[131072]{0}', space=vmem, size = 0x20000, scoped, tag = 'input window, operand 4, single buffered']
    #allocation7 [shape = 'u8[65536]{0}', space=vmem, size = 0x10000, scoped, tag = 'input window, operand 6, single buffered']
    #allocation8 [shape = 's32[1]{0}', space=sflag, size = 0x4, scoped, tag = 'scoped memory for simple_rnn_forward.1']
    %13 = vsyncpa [#allocation3], 0
    %14 = vsyncpa [#allocation5], 0
    %15 = vsyncpa [#allocation8], 0
    // Predicated region
    $region2: #{simple_rnn_forward.1} parent=1 // pred_check
      _
    $region3: #{simple_rnn_forward.1} parent=1 // pred_check_branch
      %17 = sbr.rel (0) target = $region5
    $region4: #{simple_rnn_forward.1} parent=1 // pred_region
      _
    $region5: #{simple_rnn_forward.1} parent=1 // pred_fallthru
      _
    // Predicated region
    $region6: #{simple_rnn_forward.1} parent=1 // pred_check
      _
    $region7: #{simple_rnn_forward.1} parent=1 // pred_check_branch
      %19 = sbr.rel (0) target = $region9
    $region8: #{simple_rnn_forward.1} parent=1 // pred_region
      _
    $region9: #{simple_rnn_forward.1} parent=1 // pred_fallthru
      _
    // Predicated region
    $region10: #{simple_rnn_forward.1} parent=1 // pred_check
      _
    $region11: #{simple_rnn_forward.1} parent=1 // pred_check_branch
      %21 = sbr.rel (0) target = $region13
    $region12: #{simple_rnn_forward.1} parent=1 // pred_region
      %s23 = ssub.s32 1024, 1024
      %24 = vsyncadd [#allocation3], %s23
      %s25 = sshll.u32 [#allocation2], 4
      %s26 = int_to_ptr.vmem [resolvable:$true] %s25
      %31 = dma.hbm_to_vmem [thread:$0]  %s2, 1024, %s26, [#allocation3], 64, 64, 4
    $region13: #{simple_rnn_forward.1} parent=1 // pred_fallthru
      _
    // Predicated region
    $region14: #{simple_rnn_forward.1} parent=1 // pred_check
      _
    $region15: #{simple_rnn_forward.1} parent=1 // pred_check_branch
      %33 = sbr.rel (0) target = $region17
    $region16: #{simple_rnn_forward.1} parent=1 // pred_region
      %s35 = ssub.s32 2048, 2048
      %36 = vsyncadd [#allocation5], %s35
      %s37 = sshll.u32 [#allocation4], 4
      %s38 = int_to_ptr.vmem [resolvable:$true] %s37
      %43 = dma.hbm_to_vmem [thread:$0]  %s3, 2048, %s38, [#allocation5], 128, 128, 8
    $region17: #{simple_rnn_forward.1} parent=1 // pred_fallthru
      _
    // Predicated region
    $region18: #{simple_rnn_forward.1} parent=1 // pred_check
      _
    $region19: #{simple_rnn_forward.1} parent=1 // pred_check_branch
      %45 = sbr.rel (0) target = $region21
    $region20: #{simple_rnn_forward.1} parent=1 // pred_region
      %s47 = ssub.s32 4096, 4096
      %48 = vsyncadd [#allocation5], %s47
      %s49 = sshll.u32 [#allocation6], 4
      %s50 = int_to_ptr.vmem [resolvable:$true] %s49
      %55 = dma.hbm_to_vmem [thread:$0]  %s4, 4096, %s50, [#allocation5], 128, 128, 8
    $region21: #{simple_rnn_forward.1} parent=1 // pred_fallthru
      _
    // Predicated region
    $region22: #{simple_rnn_forward.1} parent=1 // pred_check
      _
    $region23: #{simple_rnn_forward.1} parent=1 // pred_check_branch
      %57 = sbr.rel (0) target = $region25
    $region24: #{simple_rnn_forward.1} parent=1 // pred_region
      _
    $region25: #{simple_rnn_forward.1} parent=1 // pred_fallthru
      _
    // Predicated region
    $region26: #{simple_rnn_forward.1} parent=1 // pred_check
      _
    $region27: #{simple_rnn_forward.1} parent=1 // pred_check_branch
      %59 = sbr.rel (0) target = $region29
    $region28: #{simple_rnn_forward.1} parent=1 // pred_region
      %s61 = ssub.s32 2048, 2048
      %62 = vsyncadd [#allocation8], %s61
      %s63 = sshll.u32 [#allocation7], 4
      %s64 = int_to_ptr.vmem [resolvable:$true] %s63
      %69 = dma.hbm_to_vmem [thread:$0]  %s6, 2048, %s64, [#allocation8], 64, 64, 4
    $region29: #{simple_rnn_forward.1} parent=1 // pred_fallthru
      _
    // Predicated region
    $region30: #{simple_rnn_forward.1} parent=1 // pred_check
      _
    $region31: #{simple_rnn_forward.1} parent=1 // pred_check_branch
      %71 = sbr.rel (0) target = $region33
    $region32: #{simple_rnn_forward.1} parent=1 // pred_region
      _
    $region33: #{simple_rnn_forward.1} parent=1 // pred_fallthru
      _
    // Predicated region
    $region34: #{simple_rnn_forward.1} parent=1 // pred_check
      _
    $region35: #{simple_rnn_forward.1} parent=1 // pred_check_branch
      %73 = sbr.rel (0) target = $region37
    $region36: #{simple_rnn_forward.1} parent=1 // pred_region
      %74 = dma.done [#allocation3], 1024
    $region37: #{simple_rnn_forward.1} parent=1 // pred_fallthru
      _
    // Predicated region
    $region38: #{simple_rnn_forward.1} parent=1 // pred_check
      _
    $region39: #{simple_rnn_forward.1} parent=1 // pred_check_branch
      %76 = sbr.rel (0) target = $region41
    $region40: #{simple_rnn_forward.1} parent=1 // pred_region
      %77 = dma.done [#allocation5], 2048
    $region41: #{simple_rnn_forward.1} parent=1 // pred_fallthru
      _
    // Predicated region
    $region42: #{simple_rnn_forward.1} parent=1 // pred_check
      _
    $region43: #{simple_rnn_forward.1} parent=1 // pred_check_branch
      %79 = sbr.rel (0) target = $region45
    $region44: #{simple_rnn_forward.1} parent=1 // pred_region
      %80 = dma.done [#allocation5], 4096
    $region45: #{simple_rnn_forward.1} parent=1 // pred_fallthru
      _
    // Predicated region
    $region46: #{simple_rnn_forward.1} parent=1 // pred_check
      _
    $region47: #{simple_rnn_forward.1} parent=1 // pred_check_branch
      %82 = sbr.rel (0) target = $region49
    $region48: #{simple_rnn_forward.1} parent=1 // pred_region
      %83 = dma.done [#allocation8], 2048
    $region49: #{simple_rnn_forward.1} parent=1 // pred_fallthru
      _
    %v85 = vlaneseq
    %v86 = vand.u32 %v85, 127
    %v87 = vld [vmem:[%s0] sm:$0xff]
    %v88 = vld [vmem:[%s0 + $0x8] sm:$0xff]
    %89 = vset.pattern.permute.xlu0 0
    %90 = vperm.xlu0 %89, %v87
    %v91 = vpop.permute.xlu0 %90
    %92 = vset.pattern.permute.xlu0 0
    %93 = vperm.xlu0 %92, %v88
    %v94 = vpop.permute.xlu0 %93
    %vm95 = vcmp.eq.s32.totalorder %v91, %v86
    %vm96 = vcmp.eq.s32.totalorder %v94, %v86
    %v97 = vsel %vm95, 1.0, 0.0
    %v98 = vsel %vm96, 1.0, 0.0
    %v99 = vpack.c.bf16 %v98, %v97
    %v100 = vld [vmem:[#allocation2] sm:$0xf]
    %v101 = vld [vmem:[#allocation2 + $0x4] sm:$0xf]
    %v102 = vld [vmem:[#allocation2 + $0x8] sm:$0xf]
    %v103 = vld [vmem:[#allocation2 + $0xc] sm:$0xf]
    %v104 = vld [vmem:[#allocation2 + $0x10] sm:$0xf]
    %v105 = vld [vmem:[#allocation2 + $0x14] sm:$0xf]
    %v106 = vld [vmem:[#allocation2 + $0x18] sm:$0xf]
    %v107 = vld [vmem:[#allocation2 + $0x1c] sm:$0xf]
    %v108 = vld [vmem:[#allocation2 + $0x20] sm:$0xf]
    %v109 = vld [vmem:[#allocation2 + $0x24] sm:$0xf]
    %v110 = vld [vmem:[#allocation2 + $0x28] sm:$0xf]
    %v111 = vld [vmem:[#allocation2 + $0x2c] sm:$0xf]
    %v112 = vld [vmem:[#allocation2 + $0x30] sm:$0xf]
    %v113 = vld [vmem:[#allocation2 + $0x34] sm:$0xf]
    %v114 = vld [vmem:[#allocation2 + $0x38] sm:$0xf]
    %v115 = vld [vmem:[#allocation2 + $0x3c] sm:$0xf]
    %v132 = vunpack.c.l.b16 %v100
    %v133 = vunpack.c.l.b16 %v101
    %v134 = vunpack.c.l.b16 %v102
    %v135 = vunpack.c.l.b16 %v103
    %v136 = vunpack.c.l.b16 %v104
    %v137 = vunpack.c.l.b16 %v105
    %v138 = vunpack.c.l.b16 %v106
    %v139 = vunpack.c.l.b16 %v107
    %v140 = vunpack.c.l.b16 %v108
    %v141 = vunpack.c.l.b16 %v109
    %v142 = vunpack.c.l.b16 %v110
    %v143 = vunpack.c.l.b16 %v111
    %v144 = vunpack.c.l.b16 %v112
    %v145 = vunpack.c.l.b16 %v113
    %v146 = vunpack.c.l.b16 %v114
    %v147 = vunpack.c.l.b16 %v115
    %v148 = vpack.c.b16 %v133, %v132
    %v149 = vpack.c.b16 %v135, %v134
    %v150 = vpack.c.b16 %v137, %v136
    %v151 = vpack.c.b16 %v139, %v138
    %v152 = vpack.c.b16 %v141, %v140
    %v153 = vpack.c.b16 %v143, %v142
    %v154 = vpack.c.b16 %v145, %v144
    %v155 = vpack.c.b16 %v147, %v146
    %164 = vmatprep.subr.bf16.mxu0 0
    %165 = vmatpush1.bf16.msra.mxu0 %v155
    %166 = vmatprep.subr.bf16.mxu0 0
    %167 = vmatpush1.bf16.msra.mxu0 %v154
    %168 = vmatprep.subr.bf16.mxu0 0
    %169 = vmatpush1.bf16.msra.mxu0 %v153
    %170 = vmatprep.subr.bf16.mxu0 0
    %171 = vmatpush1.bf16.msra.mxu0 %v152
    %172 = vmatprep.subr.bf16.mxu0 0
    %173 = vmatpush1.bf16.msra.mxu0 %v151
    %174 = vmatprep.subr.bf16.mxu0 0
    %175 = vmatpush1.bf16.msra.mxu0 %v150
    %176 = vmatprep.subr.bf16.mxu0 0
    %177 = vmatpush1.bf16.msra.mxu0 %v149
    %178 = vmatprep.subr.bf16.mxu0 0
    %179 = vmatpush1.bf16.msra.mxu0 %v148
    %180 = vmatprep.subr.bf16.mxu0 0
    %181 = vmatpush2.bf16.msra.mxu0 0
    %182 = vmatprep.subr.bf16.mxu0 0
    %183 = vmatpush2.bf16.msra.mxu0 0
    %184 = vmatprep.subr.bf16.mxu0 0
    %185 = vmatpush2.bf16.msra.mxu0 0
    %186 = vmatprep.subr.bf16.mxu0 0
    %187 = vmatpush2.bf16.msra.mxu0 0
    %188 = vmatprep.subr.bf16.mxu0 0
    %189 = vmatpush2.bf16.msra.mxu0 0
    %190 = vmatprep.subr.bf16.mxu0 0
    %191 = vmatpush2.bf16.msra.mxu0 0
    %192 = vmatprep.subr.bf16.mxu0 0
    %193 = vmatpush2.bf16.msra.mxu0 0
    %194 = vmatprep.subr.bf16.mxu0 0
    %195 = vmatpush2.bf16.msra.mxu0 0
    %196 = vmatprep.mubr.bf16.mxu0 0
    %197 = vmatmul.mubr.bf16.gmra.mxu0 %v99
    %v198 = vpop.f32.mrf.mxu0
    %v199 = vadd.f32 0.0, %v198
    %v200 = vpop.f32.mrf.mxu0
    %v201 = vpop.f32.mrf.mxu0
    %v202 = vadd.f32 0.0, %v201
    %v203 = vpop.f32.mrf.mxu0
    %204 = vdwg.mxu0
    %v205 = vpack.c.bf16 %v202, %v199
    %v206 = vld [vmem:[#allocation4] sm:$0xff]
    %v207 = vld [vmem:[#allocation4 + $0x8] sm:$0xff]
    %v208 = vld [vmem:[#allocation4 + $0x10] sm:$0xff]
    %v209 = vld [vmem:[#allocation4 + $0x18] sm:$0xff]
    %v210 = vld [vmem:[#allocation4 + $0x20] sm:$0xff]
    %v211 = vld [vmem:[#allocation4 + $0x28] sm:$0xff]
    %v212 = vld [vmem:[#allocation4 + $0x30] sm:$0xff]
    %v213 = vld [vmem:[#allocation4 + $0x38] sm:$0xff]
    %v214 = vld [vmem:[#allocation4 + $0x40] sm:$0xff]
    %v215 = vld [vmem:[#allocation4 + $0x48] sm:$0xff]
    %v216 = vld [vmem:[#allocation4 + $0x50] sm:$0xff]
    %v217 = vld [vmem:[#allocation4 + $0x58] sm:$0xff]
    %v218 = vld [vmem:[#allocation4 + $0x60] sm:$0xff]
    %v219 = vld [vmem:[#allocation4 + $0x68] sm:$0xff]
    %v220 = vld [vmem:[#allocation4 + $0x70] sm:$0xff]
    %v221 = vld [vmem:[#allocation4 + $0x78] sm:$0xff]
    %v222 = vld [vmem:[%s5] sm:$0x3]
    %v224 = vlaneseq
    %v225 = vshrl.u32 %v224, 7
    %v226 = vsub.s32 0, %v225
    %v227 = vrot.slane %v222, %v226
    %v228 = vlaneseq
    %v229 = vshrl.u32 %v228, 7
    %v230 = vsub.s32 1, %v229
    %v231 = vrot.slane %v222, %v230
    %v250 = vunpack.c.l.b16 %v206
    %v251 = vunpack.c.h.b16 %v206
    %v252 = vunpack.c.l.b16 %v207
    %v253 = vunpack.c.h.b16 %v207
    %v254 = vunpack.c.l.b16 %v208
    %v255 = vunpack.c.h.b16 %v208
    %v256 = vunpack.c.l.b16 %v209
    %v257 = vunpack.c.h.b16 %v209
    %v258 = vunpack.c.l.b16 %v210
    %v259 = vunpack.c.h.b16 %v210
    %v260 = vunpack.c.l.b16 %v211
    %v261 = vunpack.c.h.b16 %v211
    %v262 = vunpack.c.l.b16 %v212
    %v263 = vunpack.c.h.b16 %v212
    %v264 = vunpack.c.l.b16 %v213
    %v265 = vunpack.c.h.b16 %v213
    %v266 = vunpack.c.l.b16 %v214
    %v267 = vunpack.c.h.b16 %v214
    %v268 = vunpack.c.l.b16 %v215
    %v269 = vunpack.c.h.b16 %v215
    %v270 = vunpack.c.l.b16 %v216
    %v271 = vunpack.c.h.b16 %v216
    %v272 = vunpack.c.l.b16 %v217
    %v273 = vunpack.c.h.b16 %v217
    %v274 = vunpack.c.l.b16 %v218
    %v275 = vunpack.c.h.b16 %v218
    %v276 = vunpack.c.l.b16 %v219
    %v277 = vunpack.c.h.b16 %v219
    %v278 = vunpack.c.l.b16 %v220
    %v279 = vunpack.c.h.b16 %v220
    %v280 = vunpack.c.l.b16 %v221
    %v281 = vunpack.c.h.b16 %v221
    %v282 = vpack.c.b16 %v252, %v250
    %v283 = vpack.c.b16 %v253, %v251
    %v284 = vpack.c.b16 %v256, %v254
    %v285 = vpack.c.b16 %v257, %v255
    %v286 = vpack.c.b16 %v260, %v258
    %v287 = vpack.c.b16 %v261, %v259
    %v288 = vpack.c.b16 %v264, %v262
    %v289 = vpack.c.b16 %v265, %v263
    %v290 = vpack.c.b16 %v268, %v266
    %v291 = vpack.c.b16 %v269, %v267
    %v292 = vpack.c.b16 %v272, %v270
    %v293 = vpack.c.b16 %v273, %v271
    %v294 = vpack.c.b16 %v276, %v274
    %v295 = vpack.c.b16 %v277, %v275
    %v296 = vpack.c.b16 %v280, %v278
    %v297 = vpack.c.b16 %v281, %v279
    %314 = vmatprep.subr.bf16.mxu0 %v297
    %315 = vmatpush1.bf16.msra.mxu0 %v296
    %316 = vmatprep.subr.bf16.mxu0 %v295
    %317 = vmatpush1.bf16.msra.mxu0 %v294
    %318 = vmatprep.subr.bf16.mxu0 %v293
    %319 = vmatpush1.bf16.msra.mxu0 %v292
    %320 = vmatprep.subr.bf16.mxu0 %v291
    %321 = vmatpush1.bf16.msra.mxu0 %v290
    %322 = vmatprep.subr.bf16.mxu0 %v289
    %323 = vmatpush1.bf16.msra.mxu0 %v288
    %324 = vmatprep.subr.bf16.mxu0 %v287
    %325 = vmatpush1.bf16.msra.mxu0 %v286
    %326 = vmatprep.subr.bf16.mxu0 %v285
    %327 = vmatpush1.bf16.msra.mxu0 %v284
    %328 = vmatprep.subr.bf16.mxu0 %v283
    %329 = vmatpush1.bf16.msra.mxu0 %v282
    %330 = vmatprep.subr.bf16.mxu0 0
    %331 = vmatpush2.bf16.msra.mxu0 0
    %332 = vmatprep.subr.bf16.mxu0 0
    %333 = vmatpush2.bf16.msra.mxu0 0
    %334 = vmatprep.subr.bf16.mxu0 0
    %335 = vmatpush2.bf16.msra.mxu0 0
    %336 = vmatprep.subr.bf16.mxu0 0
    %337 = vmatpush2.bf16.msra.mxu0 0
    %338 = vmatprep.subr.bf16.mxu0 0
    %339 = vmatpush2.bf16.msra.mxu0 0
    %340 = vmatprep.subr.bf16.mxu0 0
    %341 = vmatpush2.bf16.msra.mxu0 0
    %342 = vmatprep.subr.bf16.mxu0 0
    %343 = vmatpush2.bf16.msra.mxu0 0
    %344 = vmatprep.subr.bf16.mxu0 0
    %345 = vmatpush2.bf16.msra.mxu0 0
    %346 = vmatprep.mubr.bf16.mxu0 0
    %347 = vmatmul.mubr.bf16.gmra.mxu0 %v205
    %v348 = vpop.f32.mrf.mxu0
    %v349 = vadd.f32 %v227, %v348
    %v350 = vpop.f32.mrf.mxu0
    %v351 = vadd.f32 %v231, %v350
    %v352 = vpop.f32.mrf.mxu0
    %v353 = vadd.f32 %v227, %v352
    %v354 = vpop.f32.mrf.mxu0
    %v355 = vadd.f32 %v231, %v354
    %356 = vdwg.mxu0
    %v357 = vld [vmem:[%s1] sm:$0x3]
    %vm358 = vcmp.gt.s32.totalorder %v357, 0
    %vm359 = vcmp.gt.s32.totalorder %v357, 1
    %vm360 = vcmp.gt.s32.totalorder %v357, 2
    %vm361 = vcmp.gt.s32.totalorder %v357, 3
    %vm362 = vcmp.gt.s32.totalorder %v357, 4
    %vm363 = vcmp.gt.s32.totalorder %v357, 5
    %vm364 = vcmp.gt.s32.totalorder %v357, 6
    %vm365 = vcmp.gt.s32.totalorder %v357, 7
    %v366 = vld [vmem:[#allocation6] sm:$0xff]
    %v367 = vld [vmem:[#allocation6 + $0x8] sm:$0xff]
    %v368 = vld [vmem:[#allocation6 + $0x10] sm:$0xff]
    %v369 = vld [vmem:[#allocation6 + $0x18] sm:$0xff]
    %v370 = vld [vmem:[#allocation6 + $0x20] sm:$0xff]
    %v371 = vld [vmem:[#allocation6 + $0x28] sm:$0xff]
    %v372 = vld [vmem:[#allocation6 + $0x30] sm:$0xff]
    %v373 = vld [vmem:[#allocation6 + $0x38] sm:$0xff]
    %v374 = vld [vmem:[#allocation6 + $0x40] sm:$0xff]
    %v375 = vld [vmem:[#allocation6 + $0x48] sm:$0xff]
    %v376 = vld [vmem:[#allocation6 + $0x50] sm:$0xff]
    %v377 = vld [vmem:[#allocation6 + $0x58] sm:$0xff]
    %v378 = vld [vmem:[#allocation6 + $0x60] sm:$0xff]
    %v379 = vld [vmem:[#allocation6 + $0x68] sm:$0xff]
    %v380 = vld [vmem:[#allocation6 + $0x70] sm:$0xff]
    %v381 = vld [vmem:[#allocation6 + $0x78] sm:$0xff]
    %v382 = vld [vmem:[#allocation6 + $0x80] sm:$0xff]
    %v383 = vld [vmem:[#allocation6 + $0x88] sm:$0xff]
    %v384 = vld [vmem:[#allocation6 + $0x90] sm:$0xff]
    %v385 = vld [vmem:[#allocation6 + $0x98] sm:$0xff]
    %v386 = vld [vmem:[#allocation6 + $0xa0] sm:$0xff]
    %v387 = vld [vmem:[#allocation6 + $0xa8] sm:$0xff]
    %v388 = vld [vmem:[#allocation6 + $0xb0] sm:$0xff]
    %v389 = vld [vmem:[#allocation6 + $0xb8] sm:$0xff]
    %v390 = vld [vmem:[#allocation6 + $0xc0] sm:$0xff]
    %v391 = vld [vmem:[#allocation6 + $0xc8] sm:$0xff]
    %v392 = vld [vmem:[#allocation6 + $0xd0] sm:$0xff]
    %v393 = vld [vmem:[#allocation6 + $0xd8] sm:$0xff]
    %v394 = vld [vmem:[#allocation6 + $0xe0] sm:$0xff]
    %v395 = vld [vmem:[#allocation6 + $0xe8] sm:$0xff]
    %v396 = vld [vmem:[#allocation6 + $0xf0] sm:$0xff]
    %v397 = vld [vmem:[#allocation6 + $0xf8] sm:$0xff]
    %v430 = vunpack.c.l.b16 %v366
    %v431 = vunpack.c.h.b16 %v366
    %v432 = vunpack.c.l.b16 %v367
    %v433 = vunpack.c.h.b16 %v367
    %v434 = vunpack.c.l.b16 %v368
    %v435 = vunpack.c.h.b16 %v368
    %v436 = vunpack.c.l.b16 %v369
    %v437 = vunpack.c.h.b16 %v369
    %v438 = vunpack.c.l.b16 %v370
    %v439 = vunpack.c.h.b16 %v370
    %v440 = vunpack.c.l.b16 %v371
    %v441 = vunpack.c.h.b16 %v371
    %v442 = vunpack.c.l.b16 %v372
    %v443 = vunpack.c.h.b16 %v372
    %v444 = vunpack.c.l.b16 %v373
    %v445 = vunpack.c.h.b16 %v373
    %v446 = vunpack.c.l.b16 %v374
    %v447 = vunpack.c.h.b16 %v374
    %v448 = vunpack.c.l.b16 %v375
    %v449 = vunpack.c.h.b16 %v375
    %v450 = vunpack.c.l.b16 %v376
    %v451 = vunpack.c.h.b16 %v376
    %v452 = vunpack.c.l.b16 %v377
    %v453 = vunpack.c.h.b16 %v377
    %v454 = vunpack.c.l.b16 %v378
    %v455 = vunpack.c.h.b16 %v378
    %v456 = vunpack.c.l.b16 %v379
    %v457 = vunpack.c.h.b16 %v379
    %v458 = vunpack.c.l.b16 %v380
    %v459 = vunpack.c.h.b16 %v380
    %v460 = vunpack.c.l.b16 %v381
    %v461 = vunpack.c.h.b16 %v381
    %v462 = vunpack.c.l.b16 %v382
    %v463 = vunpack.c.h.b16 %v382
    %v464 = vunpack.c.l.b16 %v383
    %v465 = vunpack.c.h.b16 %v383
    %v466 = vunpack.c.l.b16 %v384
    %v467 = vunpack.c.h.b16 %v384
    %v468 = vunpack.c.l.b16 %v385
    %v469 = vunpack.c.h.b16 %v385
    %v470 = vunpack.c.l.b16 %v386
    %v471 = vunpack.c.h.b16 %v386
    %v472 = vunpack.c.l.b16 %v387
    %v473 = vunpack.c.h.b16 %v387
    %v474 = vunpack.c.l.b16 %v388
    %v475 = vunpack.c.h.b16 %v388
    %v476 = vunpack.c.l.b16 %v389
    %v477 = vunpack.c.h.b16 %v389
    %v478 = vunpack.c.l.b16 %v390
    %v479 = vunpack.c.h.b16 %v390
    %v480 = vunpack.c.l.b16 %v391
    %v481 = vunpack.c.h.b16 %v391
    %v482 = vunpack.c.l.b16 %v392
    %v483 = vunpack.c.h.b16 %v392
    %v484 = vunpack.c.l.b16 %v393
    %v485 = vunpack.c.h.b16 %v393
    %v486 = vunpack.c.l.b16 %v394
    %v487 = vunpack.c.h.b16 %v394
    %v488 = vunpack.c.l.b16 %v395
    %v489 = vunpack.c.h.b16 %v395
    %v490 = vunpack.c.l.b16 %v396
    %v491 = vunpack.c.h.b16 %v396
    %v492 = vunpack.c.l.b16 %v397
    %v493 = vunpack.c.h.b16 %v397
    %v494 = vpack.c.b16 %v432, %v430
    %v495 = vpack.c.b16 %v433, %v431
    %v496 = vpack.c.b16 %v436, %v434
    %v497 = vpack.c.b16 %v437, %v435
    %v498 = vpack.c.b16 %v440, %v438
    %v499 = vpack.c.b16 %v441, %v439
    %v500 = vpack.c.b16 %v444, %v442
    %v501 = vpack.c.b16 %v445, %v443
    %v502 = vpack.c.b16 %v448, %v446
    %v503 = vpack.c.b16 %v449, %v447
    %v504 = vpack.c.b16 %v452, %v450
    %v505 = vpack.c.b16 %v453, %v451
    %v506 = vpack.c.b16 %v456, %v454
    %v507 = vpack.c.b16 %v457, %v455
    %v508 = vpack.c.b16 %v460, %v458
    %v509 = vpack.c.b16 %v461, %v459
    %v510 = vpack.c.b16 %v464, %v462
    %v511 = vpack.c.b16 %v465, %v463
    %v512 = vpack.c.b16 %v468, %v466
    %v513 = vpack.c.b16 %v469, %v467
    %v514 = vpack.c.b16 %v472, %v470
    %v515 = vpack.c.b16 %v473, %v471
    %v516 = vpack.c.b16 %v476, %v474
    %v517 = vpack.c.b16 %v477, %v475
    %v518 = vpack.c.b16 %v480, %v478
    %v519 = vpack.c.b16 %v481, %v479
    %v520 = vpack.c.b16 %v484, %v482
    %v521 = vpack.c.b16 %v485, %v483
    %v522 = vpack.c.b16 %v488, %v486
    %v523 = vpack.c.b16 %v489, %v487
    %v524 = vpack.c.b16 %v492, %v490
    %v525 = vpack.c.b16 %v493, %v491
    %558 = vmatprep.subr.bf16.mxu0 %v509
    %559 = vmatpush1.bf16.msra.mxu0 %v508
    %560 = vmatprep.subr.bf16.mxu0 %v507
    %561 = vmatpush1.bf16.msra.mxu0 %v506
    %562 = vmatprep.subr.bf16.mxu0 %v505
    %563 = vmatpush1.bf16.msra.mxu0 %v504
    %564 = vmatprep.subr.bf16.mxu0 %v503
    %565 = vmatpush1.bf16.msra.mxu0 %v502
    %566 = vmatprep.subr.bf16.mxu0 %v501
    %567 = vmatpush1.bf16.msra.mxu0 %v500
    %568 = vmatprep.subr.bf16.mxu0 %v499
    %569 = vmatpush1.bf16.msra.mxu0 %v498
    %570 = vmatprep.subr.bf16.mxu0 %v497
    %571 = vmatpush1.bf16.msra.mxu0 %v496
    %572 = vmatprep.subr.bf16.mxu0 %v495
    %573 = vmatpush1.bf16.msra.mxu0 %v494
    %574 = vmatprep.subr.bf16.mxu0 %v525
    %575 = vmatpush2.bf16.msra.mxu0 %v524
    %576 = vmatprep.subr.bf16.mxu0 %v523
    %577 = vmatpush2.bf16.msra.mxu0 %v522
    %578 = vmatprep.subr.bf16.mxu0 %v521
    %579 = vmatpush2.bf16.msra.mxu0 %v520
    %580 = vmatprep.subr.bf16.mxu0 %v519
    %581 = vmatpush2.bf16.msra.mxu0 %v518
    %582 = vmatprep.subr.bf16.mxu0 %v517
    %583 = vmatpush2.bf16.msra.mxu0 %v516
    %584 = vmatprep.subr.bf16.mxu0 %v515
    %585 = vmatpush2.bf16.msra.mxu0 %v514
    %586 = vmatprep.subr.bf16.mxu0 %v513
    %587 = vmatpush2.bf16.msra.mxu0 %v512
    %588 = vmatprep.subr.bf16.mxu0 %v511
    %589 = vmatpush2.bf16.msra.mxu0 %v510
    %590 = vmatprep.mubr.bf16.mxu0 0
    %591 = vmatmul.mubr.bf16.gmra.mxu0 0
    %v592 = vpop.f32.mrf.mxu0
    %v593 = vadd.f32 0.0, %v592
    %v594 = vpop.f32.mrf.mxu0
    %v595 = vadd.f32 0.0, %v594
    %v596 = vpop.f32.mrf.mxu0
    %v597 = vpop.f32.mrf.mxu0
    %598 = vdwg.mxu0
    %v599 = vadd.f32 %v349, %v593
    %v600 = vadd.f32 %v351, %v595
    %v601 = vtanh.pop %v599
    %v602 = vtanh.pop %v600
    %v603 = vsel %vm358, 1, 0
    %604 = vset.pattern.permute.xlu0 0
    %605 = vperm.xlu0 %604, %v603
    %v606 = vpop.permute.xlu0 %605
    %vm607 = vcmp.eq.s32.totalorder %v606, 1
    %v608 = vsel %vm607, %v601, 0.0
    %v609 = vsel %vm607, %v602, 0.0
    %v610 = vpack.c.bf16 %v608, %v608
    %v611 = vpack.c.bf16 %v609, %v609
    %612 = vmatprep.subr.bf16.mxu0 %v509
    %613 = vmatpush1.bf16.msra.mxu0 %v508
    %614 = vmatprep.subr.bf16.mxu0 %v507
    %615 = vmatpush1.bf16.msra.mxu0 %v506
    %616 = vmatprep.subr.bf16.mxu0 %v505
    %617 = vmatpush1.bf16.msra.mxu0 %v504
    %618 = vmatprep.subr.bf16.mxu0 %v503
    %619 = vmatpush1.bf16.msra.mxu0 %v502
    %620 = vmatprep.subr.bf16.mxu0 %v501
    %621 = vmatpush1.bf16.msra.mxu0 %v500
    %622 = vmatprep.subr.bf16.mxu0 %v499
    %623 = vmatpush1.bf16.msra.mxu0 %v498
    %624 = vmatprep.subr.bf16.mxu0 %v497
    %625 = vmatpush1.bf16.msra.mxu0 %v496
    %626 = vmatprep.subr.bf16.mxu0 %v495
    %627 = vmatpush1.bf16.msra.mxu0 %v494
    %628 = vmatprep.subr.bf16.mxu0 %v525
    %629 = vmatpush2.bf16.msra.mxu0 %v524
    %630 = vmatprep.subr.bf16.mxu0 %v523
    %631 = vmatpush2.bf16.msra.mxu0 %v522
    %632 = vmatprep.subr.bf16.mxu0 %v521
    %633 = vmatpush2.bf16.msra.mxu0 %v520
    %634 = vmatprep.subr.bf16.mxu0 %v519
    %635 = vmatpush2.bf16.msra.mxu0 %v518
    %636 = vmatprep.subr.bf16.mxu0 %v517
    %637 = vmatpush2.bf16.msra.mxu0 %v516
    %638 = vmatprep.subr.bf16.mxu0 %v515
    %639 = vmatpush2.bf16.msra.mxu0 %v514
    %640 = vmatprep.subr.bf16.mxu0 %v513
    %641 = vmatpush2.bf16.msra.mxu0 %v512
    %642 = vmatprep.subr.bf16.mxu0 %v511
    %643 = vmatpush2.bf16.msra.mxu0 %v510
    %644 = vmatprep.mubr.bf16.mxu0 %v611
    %645 = vmatmul.mubr.bf16.gmra.mxu0 %v610
    %v646 = vpop.f32.mrf.mxu0
    %v647 = vadd.f32 0.0, %v646
    %v648 = vpop.f32.mrf.mxu0
    %v649 = vadd.f32 0.0, %v648
    %v650 = vpop.f32.mrf.mxu0
    %v651 = vpop.f32.mrf.mxu0
    %652 = vdwg.mxu0
    %v655 = vrot.slane %v647, 6
    %v656 = vrot.slane %v649, 6
    %v659 = vadd.f32 %v349, %v655
    %v660 = vadd.f32 %v351, %v656
    %v661 = vtanh.pop %v659
    %v662 = vtanh.pop %v660
    %v663 = vsel %vm359, 1, 0
    %664 = vset.pattern.permute.xlu0 0
    %665 = vperm.xlu0 %664, %v663
    %v666 = vpop.permute.xlu0 %665
    %vm667 = vcmp.eq.s32.totalorder %v666, 1
    %v670 = vrot.slane %v661, 2
    %v671 = vrot.slane %v662, 2
    %v674 = vsel %vm667, %v670, %v608
    %v675 = vsel %vm667, %v671, %v609
    %v676 = vpack.c.bf16 %v674, %v674
    %v677 = vpack.c.bf16 %v675, %v675
    %678 = vmatprep.subr.bf16.mxu0 %v509
    %679 = vmatpush1.bf16.msra.mxu0 %v508
    %680 = vmatprep.subr.bf16.mxu0 %v507
    %681 = vmatpush1.bf16.msra.mxu0 %v506
    %682 = vmatprep.subr.bf16.mxu0 %v505
    %683 = vmatpush1.bf16.msra.mxu0 %v504
    %684 = vmatprep.subr.bf16.mxu0 %v503
    %685 = vmatpush1.bf16.msra.mxu0 %v502
    %686 = vmatprep.subr.bf16.mxu0 %v501
    %687 = vmatpush1.bf16.msra.mxu0 %v500
    %688 = vmatprep.subr.bf16.mxu0 %v499
    %689 = vmatpush1.bf16.msra.mxu0 %v498
    %690 = vmatprep.subr.bf16.mxu0 %v497
    %691 = vmatpush1.bf16.msra.mxu0 %v496
    %692 = vmatprep.subr.bf16.mxu0 %v495
    %693 = vmatpush1.bf16.msra.mxu0 %v494
    %694 = vmatprep.subr.bf16.mxu0 %v525
    %695 = vmatpush2.bf16.msra.mxu0 %v524
    %696 = vmatprep.subr.bf16.mxu0 %v523
    %697 = vmatpush2.bf16.msra.mxu0 %v522
    %698 = vmatprep.subr.bf16.mxu0 %v521
    %699 = vmatpush2.bf16.msra.mxu0 %v520
    %700 = vmatprep.subr.bf16.mxu0 %v519
    %701 = vmatpush2.bf16.msra.mxu0 %v518
    %702 = vmatprep.subr.bf16.mxu0 %v517
    %703 = vmatpush2.bf16.msra.mxu0 %v516
    %704 = vmatprep.subr.bf16.mxu0 %v515
    %705 = vmatpush2.bf16.msra.mxu0 %v514
    %706 = vmatprep.subr.bf16.mxu0 %v513
    %707 = vmatpush2.bf16.msra.mxu0 %v512
    %708 = vmatprep.subr.bf16.mxu0 %v511
    %709 = vmatpush2.bf16.msra.mxu0 %v510
    %710 = vmatprep.mubr.bf16.mxu0 %v677
    %711 = vmatmul.mubr.bf16.gmra.mxu0 %v676
    %v712 = vpop.f32.mrf.mxu0
    %v713 = vadd.f32 0.0, %v712
    %v714 = vpop.f32.mrf.mxu0
    %v715 = vadd.f32 0.0, %v714
    %v716 = vpop.f32.mrf.mxu0
    %v717 = vpop.f32.mrf.mxu0
    %718 = vdwg.mxu0
    %v721 = vrot.slane %v713, 4
    %v722 = vrot.slane %v715, 4
    %v725 = vadd.f32 %v349, %v721
    %v726 = vadd.f32 %v351, %v722
    %v727 = vtanh.pop %v725
    %v728 = vtanh.pop %v726
    %v729 = vsel %vm360, 1, 0
    %730 = vset.pattern.permute.xlu0 0
    %731 = vperm.xlu0 %730, %v729
    %v732 = vpop.permute.xlu0 %731
    %vm733 = vcmp.eq.s32.totalorder %v732, 1
    %v736 = vrot.slane %v727, 4
    %v737 = vrot.slane %v728, 4
    %v740 = vsel %vm733, %v736, %v674
    %v741 = vsel %vm733, %v737, %v675
    %v742 = vpack.c.bf16 %v740, %v740
    %v743 = vpack.c.bf16 %v741, %v741
    %744 = vmatprep.subr.bf16.mxu0 %v509
    %745 = vmatpush1.bf16.msra.mxu0 %v508
    %746 = vmatprep.subr.bf16.mxu0 %v507
    %747 = vmatpush1.bf16.msra.mxu0 %v506
    %748 = vmatprep.subr.bf16.mxu0 %v505
    %749 = vmatpush1.bf16.msra.mxu0 %v504
    %750 = vmatprep.subr.bf16.mxu0 %v503
    %751 = vmatpush1.bf16.msra.mxu0 %v502
    %752 = vmatprep.subr.bf16.mxu0 %v501
    %753 = vmatpush1.bf16.msra.mxu0 %v500
    %754 = vmatprep.subr.bf16.mxu0 %v499
    %755 = vmatpush1.bf16.msra.mxu0 %v498
    %756 = vmatprep.subr.bf16.mxu0 %v497
    %757 = vmatpush1.bf16.msra.mxu0 %v496
    %758 = vmatprep.subr.bf16.mxu0 %v495
    %759 = vmatpush1.bf16.msra.mxu0 %v494
    %760 = vmatprep.subr.bf16.mxu0 %v525
    %761 = vmatpush2.bf16.msra.mxu0 %v524
    %762 = vmatprep.subr.bf16.mxu0 %v523
    %763 = vmatpush2.bf16.msra.mxu0 %v522
    %764 = vmatprep.subr.bf16.mxu0 %v521
    %765 = vmatpush2.bf16.msra.mxu0 %v520
    %766 = vmatprep.subr.bf16.mxu0 %v519
    %767 = vmatpush2.bf16.msra.mxu0 %v518
    %768 = vmatprep.subr.bf16.mxu0 %v517
    %769 = vmatpush2.bf16.msra.mxu0 %v516
    %770 = vmatprep.subr.bf16.mxu0 %v515
    %771 = vmatpush2.bf16.msra.mxu0 %v514
    %772 = vmatprep.subr.bf16.mxu0 %v513
    %773 = vmatpush2.bf16.msra.mxu0 %v512
    %774 = vmatprep.subr.bf16.mxu0 %v511
    %775 = vmatpush2.bf16.msra.mxu0 %v510
    %776 = vmatprep.mubr.bf16.mxu0 %v743
    %777 = vmatmul.mubr.bf16.gmra.mxu0 %v742
    %v778 = vpop.f32.mrf.mxu0
    %v779 = vadd.f32 0.0, %v778
    %v780 = vpop.f32.mrf.mxu0
    %v781 = vadd.f32 0.0, %v780
    %v782 = vpop.f32.mrf.mxu0
    %v783 = vpop.f32.mrf.mxu0
    %784 = vdwg.mxu0
    %v787 = vrot.slane %v779, 2
    %v788 = vrot.slane %v781, 2
    %v791 = vadd.f32 %v349, %v787
    %v792 = vadd.f32 %v351, %v788
    %v793 = vtanh.pop %v791
    %v794 = vtanh.pop %v792
    %v795 = vsel %vm361, 1, 0
    %796 = vset.pattern.permute.xlu0 0
    %797 = vperm.xlu0 %796, %v795
    %v798 = vpop.permute.xlu0 %797
    %vm799 = vcmp.eq.s32.totalorder %v798, 1
    %v802 = vrot.slane %v793, 6
    %v803 = vrot.slane %v794, 6
    %v806 = vsel %vm799, %v802, %v740
    %v807 = vsel %vm799, %v803, %v741
    %v808 = vpack.c.bf16 %v806, %v806
    %v809 = vpack.c.bf16 %v807, %v807
    %810 = vmatprep.subr.bf16.mxu0 %v509
    %811 = vmatpush1.bf16.msra.mxu0 %v508
    %812 = vmatprep.subr.bf16.mxu0 %v507
    %813 = vmatpush1.bf16.msra.mxu0 %v506
    %814 = vmatprep.subr.bf16.mxu0 %v505
    %815 = vmatpush1.bf16.msra.mxu0 %v504
    %816 = vmatprep.subr.bf16.mxu0 %v503
    %817 = vmatpush1.bf16.msra.mxu0 %v502
    %818 = vmatprep.subr.bf16.mxu0 %v501
    %819 = vmatpush1.bf16.msra.mxu0 %v500
    %820 = vmatprep.subr.bf16.mxu0 %v499
    %821 = vmatpush1.bf16.msra.mxu0 %v498
    %822 = vmatprep.subr.bf16.mxu0 %v497
    %823 = vmatpush1.bf16.msra.mxu0 %v496
    %824 = vmatprep.subr.bf16.mxu0 %v495
    %825 = vmatpush1.bf16.msra.mxu0 %v494
    %826 = vmatprep.subr.bf16.mxu0 %v525
    %827 = vmatpush2.bf16.msra.mxu0 %v524
    %828 = vmatprep.subr.bf16.mxu0 %v523
    %829 = vmatpush2.bf16.msra.mxu0 %v522
    %830 = vmatprep.subr.bf16.mxu0 %v521
    %831 = vmatpush2.bf16.msra.mxu0 %v520
    %832 = vmatprep.subr.bf16.mxu0 %v519
    %833 = vmatpush2.bf16.msra.mxu0 %v518
    %834 = vmatprep.subr.bf16.mxu0 %v517
    %835 = vmatpush2.bf16.msra.mxu0 %v516
    %836 = vmatprep.subr.bf16.mxu0 %v515
    %837 = vmatpush2.bf16.msra.mxu0 %v514
    %838 = vmatprep.subr.bf16.mxu0 %v513
    %839 = vmatpush2.bf16.msra.mxu0 %v512
    %840 = vmatprep.subr.bf16.mxu0 %v511
    %841 = vmatpush2.bf16.msra.mxu0 %v510
    %842 = vmatprep.mubr.bf16.mxu0 %v809
    %843 = vmatmul.mubr.bf16.gmra.mxu0 %v808
    %v844 = vpop.f32.mrf.mxu0
    %v845 = vadd.f32 0.0, %v844
    %v846 = vpop.f32.mrf.mxu0
    %v847 = vadd.f32 0.0, %v846
    %v848 = vpop.f32.mrf.mxu0
    %v849 = vpop.f32.mrf.mxu0
    %850 = vdwg.mxu0
    %v851 = vadd.f32 %v353, %v845
    %v852 = vadd.f32 %v355, %v847
    %v853 = vtanh.pop %v851
    %v854 = vtanh.pop %v852
    %v855 = vsel %vm362, 1, 0
    %856 = vset.pattern.permute.xlu0 0
    %857 = vperm.xlu0 %856, %v855
    %v858 = vpop.permute.xlu0 %857
    %vm859 = vcmp.eq.s32.totalorder %v858, 1
    %v860 = vsel %vm859, %v853, %v806
    %v861 = vsel %vm859, %v854, %v807
    %v862 = vpack.c.bf16 %v860, %v860
    %v863 = vpack.c.bf16 %v861, %v861
    %864 = vmatprep.subr.bf16.mxu0 %v509
    %865 = vmatpush1.bf16.msra.mxu0 %v508
    %866 = vmatprep.subr.bf16.mxu0 %v507
    %867 = vmatpush1.bf16.msra.mxu0 %v506
    %868 = vmatprep.subr.bf16.mxu0 %v505
    %869 = vmatpush1.bf16.msra.mxu0 %v504
    %870 = vmatprep.subr.bf16.mxu0 %v503
    %871 = vmatpush1.bf16.msra.mxu0 %v502
    %872 = vmatprep.subr.bf16.mxu0 %v501
    %873 = vmatpush1.bf16.msra.mxu0 %v500
    %874 = vmatprep.subr.bf16.mxu0 %v499
    %875 = vmatpush1.bf16.msra.mxu0 %v498
    %876 = vmatprep.subr.bf16.mxu0 %v497
    %877 = vmatpush1.bf16.msra.mxu0 %v496
    %878 = vmatprep.subr.bf16.mxu0 %v495
    %879 = vmatpush1.bf16.msra.mxu0 %v494
    %880 = vmatprep.subr.bf16.mxu0 %v525
    %881 = vmatpush2.bf16.msra.mxu0 %v524
    %882 = vmatprep.subr.bf16.mxu0 %v523
    %883 = vmatpush2.bf16.msra.mxu0 %v522
    %884 = vmatprep.subr.bf16.mxu0 %v521
    %885 = vmatpush2.bf16.msra.mxu0 %v520
    %886 = vmatprep.subr.bf16.mxu0 %v519
    %887 = vmatpush2.bf16.msra.mxu0 %v518
    %888 = vmatprep.subr.bf16.mxu0 %v517
    %889 = vmatpush2.bf16.msra.mxu0 %v516
    %890 = vmatprep.subr.bf16.mxu0 %v515
    %891 = vmatpush2.bf16.msra.mxu0 %v514
    %892 = vmatprep.subr.bf16.mxu0 %v513
    %893 = vmatpush2.bf16.msra.mxu0 %v512
    %894 = vmatprep.subr.bf16.mxu0 %v511
    %895 = vmatpush2.bf16.msra.mxu0 %v510
    %896 = vmatprep.mubr.bf16.mxu0 %v863
    %897 = vmatmul.mubr.bf16.gmra.mxu0 %v862
    %v898 = vpop.f32.mrf.mxu0
    %v899 = vadd.f32 0.0, %v898
    %v900 = vpop.f32.mrf.mxu0
    %v901 = vadd.f32 0.0, %v900
    %v902 = vpop.f32.mrf.mxu0
    %v903 = vpop.f32.mrf.mxu0
    %904 = vdwg.mxu0
    %v907 = vrot.slane %v899, 6
    %v908 = vrot.slane %v901, 6
    %v911 = vadd.f32 %v353, %v907
    %v912 = vadd.f32 %v355, %v908
    %v913 = vtanh.pop %v911
    %v914 = vtanh.pop %v912
    %v915 = vsel %vm363, 1, 0
    %916 = vset.pattern.permute.xlu0 0
    %917 = vperm.xlu0 %916, %v915
    %v918 = vpop.permute.xlu0 %917
    %vm919 = vcmp.eq.s32.totalorder %v918, 1
    %v922 = vrot.slane %v913, 2
    %v923 = vrot.slane %v914, 2
    %v926 = vsel %vm919, %v922, %v860
    %v927 = vsel %vm919, %v923, %v861
    %v928 = vpack.c.bf16 %v926, %v926
    %v929 = vpack.c.bf16 %v927, %v927
    %930 = vmatprep.subr.bf16.mxu0 %v509
    %931 = vmatpush1.bf16.msra.mxu0 %v508
    %932 = vmatprep.subr.bf16.mxu0 %v507
    %933 = vmatpush1.bf16.msra.mxu0 %v506
    %934 = vmatprep.subr.bf16.mxu0 %v505
    %935 = vmatpush1.bf16.msra.mxu0 %v504
    %936 = vmatprep.subr.bf16.mxu0 %v503
    %937 = vmatpush1.bf16.msra.mxu0 %v502
    %938 = vmatprep.subr.bf16.mxu0 %v501
    %939 = vmatpush1.bf16.msra.mxu0 %v500
    %940 = vmatprep.subr.bf16.mxu0 %v499
    %941 = vmatpush1.bf16.msra.mxu0 %v498
    %942 = vmatprep.subr.bf16.mxu0 %v497
    %943 = vmatpush1.bf16.msra.mxu0 %v496
    %944 = vmatprep.subr.bf16.mxu0 %v495
    %945 = vmatpush1.bf16.msra.mxu0 %v494
    %946 = vmatprep.subr.bf16.mxu0 %v525
    %947 = vmatpush2.bf16.msra.mxu0 %v524
    %948 = vmatprep.subr.bf16.mxu0 %v523
    %949 = vmatpush2.bf16.msra.mxu0 %v522
    %950 = vmatprep.subr.bf16.mxu0 %v521
    %951 = vmatpush2.bf16.msra.mxu0 %v520
    %952 = vmatprep.subr.bf16.mxu0 %v519
    %953 = vmatpush2.bf16.msra.mxu0 %v518
    %954 = vmatprep.subr.bf16.mxu0 %v517
    %955 = vmatpush2.bf16.msra.mxu0 %v516
    %956 = vmatprep.subr.bf16.mxu0 %v515
    %957 = vmatpush2.bf16.msra.mxu0 %v514
    %958 = vmatprep.subr.bf16.mxu0 %v513
    %959 = vmatpush2.bf16.msra.mxu0 %v512
    %960 = vmatprep.subr.bf16.mxu0 %v511
    %961 = vmatpush2.bf16.msra.mxu0 %v510
    %962 = vmatprep.mubr.bf16.mxu0 %v929
    %963 = vmatmul.mubr.bf16.gmra.mxu0 %v928
    %v964 = vpop.f32.mrf.mxu0
    %v965 = vadd.f32 0.0, %v964
    %v966 = vpop.f32.mrf.mxu0
    %v967 = vadd.f32 0.0, %v966
    %v968 = vpop.f32.mrf.mxu0
    %v969 = vpop.f32.mrf.mxu0
    %970 = vdwg.mxu0
    %v973 = vrot.slane %v965, 4
    %v974 = vrot.slane %v967, 4
    %v977 = vadd.f32 %v353, %v973
    %v978 = vadd.f32 %v355, %v974
    %v979 = vtanh.pop %v977
    %v980 = vtanh.pop %v978
    %v981 = vsel %vm364, 1, 0
    %982 = vset.pattern.permute.xlu0 0
    %983 = vperm.xlu0 %982, %v981
    %v984 = vpop.permute.xlu0 %983
    %vm985 = vcmp.eq.s32.totalorder %v984, 1
    %v988 = vrot.slane %v979, 4
    %v989 = vrot.slane %v980, 4
    %v992 = vsel %vm985, %v988, %v926
    %v993 = vsel %vm985, %v989, %v927
    %v994 = vpack.c.bf16 %v992, %v992
    %v995 = vpack.c.bf16 %v993, %v993
    %996 = vmatprep.subr.bf16.mxu0 %v509
    %997 = vmatpush1.bf16.msra.mxu0 %v508
    %998 = vmatprep.subr.bf16.mxu0 %v507
    %999 = vmatpush1.bf16.msra.mxu0 %v506
    %1000 = vmatprep.subr.bf16.mxu0 %v505
    %1001 = vmatpush1.bf16.msra.mxu0 %v504
    %1002 = vmatprep.subr.bf16.mxu0 %v503
    %1003 = vmatpush1.bf16.msra.mxu0 %v502
    %1004 = vmatprep.subr.bf16.mxu0 %v501
    %1005 = vmatpush1.bf16.msra.mxu0 %v500
    %1006 = vmatprep.subr.bf16.mxu0 %v499
    %1007 = vmatpush1.bf16.msra.mxu0 %v498
    %1008 = vmatprep.subr.bf16.mxu0 %v497
    %1009 = vmatpush1.bf16.msra.mxu0 %v496
    %1010 = vmatprep.subr.bf16.mxu0 %v495
    %1011 = vmatpush1.bf16.msra.mxu0 %v494
    %1012 = vmatprep.subr.bf16.mxu0 %v525
    %1013 = vmatpush2.bf16.msra.mxu0 %v524
    %1014 = vmatprep.subr.bf16.mxu0 %v523
    %1015 = vmatpush2.bf16.msra.mxu0 %v522
    %1016 = vmatprep.subr.bf16.mxu0 %v521
    %1017 = vmatpush2.bf16.msra.mxu0 %v520
    %1018 = vmatprep.subr.bf16.mxu0 %v519
    %1019 = vmatpush2.bf16.msra.mxu0 %v518
    %1020 = vmatprep.subr.bf16.mxu0 %v517
    %1021 = vmatpush2.bf16.msra.mxu0 %v516
    %1022 = vmatprep.subr.bf16.mxu0 %v515
    %1023 = vmatpush2.bf16.msra.mxu0 %v514
    %1024 = vmatprep.subr.bf16.mxu0 %v513
    %1025 = vmatpush2.bf16.msra.mxu0 %v512
    %1026 = vmatprep.subr.bf16.mxu0 %v511
    %1027 = vmatpush2.bf16.msra.mxu0 %v510
    %1028 = vmatprep.mubr.bf16.mxu0 %v995
    %1029 = vmatmul.mubr.bf16.gmra.mxu0 %v994
    %v1030 = vpop.f32.mrf.mxu0
    %v1031 = vadd.f32 0.0, %v1030
    %v1032 = vpop.f32.mrf.mxu0
    %v1033 = vadd.f32 0.0, %v1032
    %v1034 = vpop.f32.mrf.mxu0
    %v1035 = vpop.f32.mrf.mxu0
    %1036 = vdwg.mxu0
    %v1039 = vrot.slane %v1031, 2
    %v1040 = vrot.slane %v1033, 2
    %v1043 = vadd.f32 %v353, %v1039
    %v1044 = vadd.f32 %v355, %v1040
    %v1045 = vtanh.pop %v1043
    %v1046 = vtanh.pop %v1044
    %v1047 = vsel %vm365, 1, 0
    %1048 = vset.pattern.permute.xlu0 0
    %1049 = vperm.xlu0 %1048, %v1047
    %v1050 = vpop.permute.xlu0 %1049
    %vm1051 = vcmp.eq.s32.totalorder %v1050, 1
    %v1054 = vrot.slane %v1045, 6
    %v1055 = vrot.slane %v1046, 6
    %v1058 = vsel %vm1051, %v1054, %v992
    %v1059 = vsel %vm1051, %v1055, %v993
    %v1060 = vpack.c.bf16 %v1058, %v1058
    %v1061 = vpack.c.bf16 %v1059, %v1059
    %v1062 = vld [vmem:[#allocation7] sm:$0xf]
    %v1063 = vld [vmem:[#allocation7 + $0x4] sm:$0xf]
    %v1064 = vld [vmem:[#allocation7 + $0x8] sm:$0xf]
    %v1065 = vld [vmem:[#allocation7 + $0xc] sm:$0xf]
    %v1066 = vld [vmem:[#allocation7 + $0x10] sm:$0xf]
    %v1067 = vld [vmem:[#allocation7 + $0x14] sm:$0xf]
    %v1068 = vld [vmem:[#allocation7 + $0x18] sm:$0xf]
    %v1069 = vld [vmem:[#allocation7 + $0x1c] sm:$0xf]
    %v1070 = vld [vmem:[#allocation7 + $0x20] sm:$0xf]
    %v1071 = vld [vmem:[#allocation7 + $0x24] sm:$0xf]
    %v1072 = vld [vmem:[#allocation7 + $0x28] sm:$0xf]
    %v1073 = vld [vmem:[#allocation7 + $0x2c] sm:$0xf]
    %v1074 = vld [vmem:[#allocation7 + $0x30] sm:$0xf]
    %v1075 = vld [vmem:[#allocation7 + $0x34] sm:$0xf]
    %v1076 = vld [vmem:[#allocation7 + $0x38] sm:$0xf]
    %v1077 = vld [vmem:[#allocation7 + $0x3c] sm:$0xf]
    %v1078 = vld [vmem:[#allocation7 + $0x40] sm:$0xf]
    %v1079 = vld [vmem:[#allocation7 + $0x44] sm:$0xf]
    %v1080 = vld [vmem:[#allocation7 + $0x48] sm:$0xf]
    %v1081 = vld [vmem:[#allocation7 + $0x4c] sm:$0xf]
    %v1082 = vld [vmem:[#allocation7 + $0x50] sm:$0xf]
    %v1083 = vld [vmem:[#allocation7 + $0x54] sm:$0xf]
    %v1084 = vld [vmem:[#allocation7 + $0x58] sm:$0xf]
    %v1085 = vld [vmem:[#allocation7 + $0x5c] sm:$0xf]
    %v1086 = vld [vmem:[#allocation7 + $0x60] sm:$0xf]
    %v1087 = vld [vmem:[#allocation7 + $0x64] sm:$0xf]
    %v1088 = vld [vmem:[#allocation7 + $0x68] sm:$0xf]
    %v1089 = vld [vmem:[#allocation7 + $0x6c] sm:$0xf]
    %v1090 = vld [vmem:[#allocation7 + $0x70] sm:$0xf]
    %v1091 = vld [vmem:[#allocation7 + $0x74] sm:$0xf]
    %v1092 = vld [vmem:[#allocation7 + $0x78] sm:$0xf]
    %v1093 = vld [vmem:[#allocation7 + $0x7c] sm:$0xf]
    %v1094 = vld [vmem:[%s7] sm:$0x1]
    %v1096 = vlaneseq
    %v1097 = vshrl.u32 %v1096, 7
    %v1098 = vsub.s32 0, %v1097
    %v1099 = vrot.slane %v1094, %v1098
    %v1133 = vunpack.c.l.b16 %v1062
    %v1134 = vunpack.c.l.b16 %v1063
    %v1135 = vunpack.c.l.b16 %v1064
    %v1136 = vunpack.c.l.b16 %v1065
    %v1137 = vunpack.c.l.b16 %v1066
    %v1138 = vunpack.c.l.b16 %v1067
    %v1139 = vunpack.c.l.b16 %v1068
    %v1140 = vunpack.c.l.b16 %v1069
    %v1141 = vunpack.c.l.b16 %v1070
    %v1142 = vunpack.c.l.b16 %v1071
    %v1143 = vunpack.c.l.b16 %v1072
    %v1144 = vunpack.c.l.b16 %v1073
    %v1145 = vunpack.c.l.b16 %v1074
    %v1146 = vunpack.c.l.b16 %v1075
    %v1147 = vunpack.c.l.b16 %v1076
    %v1148 = vunpack.c.l.b16 %v1077
    %v1149 = vunpack.c.l.b16 %v1078
    %v1150 = vunpack.c.l.b16 %v1079
    %v1151 = vunpack.c.l.b16 %v1080
    %v1152 = vunpack.c.l.b16 %v1081
    %v1153 = vunpack.c.l.b16 %v1082
    %v1154 = vunpack.c.l.b16 %v1083
    %v1155 = vunpack.c.l.b16 %v1084
    %v1156 = vunpack.c.l.b16 %v1085
    %v1157 = vunpack.c.l.b16 %v1086
    %v1158 = vunpack.c.l.b16 %v1087
    %v1159 = vunpack.c.l.b16 %v1088
    %v1160 = vunpack.c.l.b16 %v1089
    %v1161 = vunpack.c.l.b16 %v1090
    %v1162 = vunpack.c.l.b16 %v1091
    %v1163 = vunpack.c.l.b16 %v1092
    %v1164 = vunpack.c.l.b16 %v1093
    %v1165 = vpack.c.b16 %v1134, %v1133
    %v1166 = vpack.c.b16 %v1136, %v1135
    %v1167 = vpack.c.b16 %v1138, %v1137
    %v1168 = vpack.c.b16 %v1140, %v1139
    %v1169 = vpack.c.b16 %v1142, %v1141
    %v1170 = vpack.c.b16 %v1144, %v1143
    %v1171 = vpack.c.b16 %v1146, %v1145
    %v1172 = vpack.c.b16 %v1148, %v1147
    %v1173 = vpack.c.b16 %v1150, %v1149
    %v1174 = vpack.c.b16 %v1152, %v1151
    %v1175 = vpack.c.b16 %v1154, %v1153
    %v1176 = vpack.c.b16 %v1156, %v1155
    %v1177 = vpack.c.b16 %v1158, %v1157
    %v1178 = vpack.c.b16 %v1160, %v1159
    %v1179 = vpack.c.b16 %v1162, %v1161
    %v1180 = vpack.c.b16 %v1164, %v1163
    %1197 = vmatprep.subr.bf16.mxu0 0
    %1198 = vmatpush1.bf16.msra.mxu0 %v1172
    %1199 = vmatprep.subr.bf16.mxu0 0
    %1200 = vmatpush1.bf16.msra.mxu0 %v1171
    %1201 = vmatprep.subr.bf16.mxu0 0
    %1202 = vmatpush1.bf16.msra.mxu0 %v1170
    %1203 = vmatprep.subr.bf16.mxu0 0
    %1204 = vmatpush1.bf16.msra.mxu0 %v1169
    %1205 = vmatprep.subr.bf16.mxu0 0
    %1206 = vmatpush1.bf16.msra.mxu0 %v1168
    %1207 = vmatprep.subr.bf16.mxu0 0
    %1208 = vmatpush1.bf16.msra.mxu0 %v1167
    %1209 = vmatprep.subr.bf16.mxu0 0
    %1210 = vmatpush1.bf16.msra.mxu0 %v1166
    %1211 = vmatprep.subr.bf16.mxu0 0
    %1212 = vmatpush1.bf16.msra.mxu0 %v1165
    %1213 = vmatprep.subr.bf16.mxu0 0
    %1214 = vmatpush2.bf16.msra.mxu0 %v1180
    %1215 = vmatprep.subr.bf16.mxu0 0
    %1216 = vmatpush2.bf16.msra.mxu0 %v1179
    %1217 = vmatprep.subr.bf16.mxu0 0
    %1218 = vmatpush2.bf16.msra.mxu0 %v1178
    %1219 = vmatprep.subr.bf16.mxu0 0
    %1220 = vmatpush2.bf16.msra.mxu0 %v1177
    %1221 = vmatprep.subr.bf16.mxu0 0
    %1222 = vmatpush2.bf16.msra.mxu0 %v1176
    %1223 = vmatprep.subr.bf16.mxu0 0
    %1224 = vmatpush2.bf16.msra.mxu0 %v1175
    %1225 = vmatprep.subr.bf16.mxu0 0
    %1226 = vmatpush2.bf16.msra.mxu0 %v1174
    %1227 = vmatprep.subr.bf16.mxu0 0
    %1228 = vmatpush2.bf16.msra.mxu0 %v1173
    %1229 = vmatprep.mubr.bf16.mxu0 %v1061
    %1230 = vmatmul.mubr.bf16.gmra.mxu0 %v1060
    %v1231 = vpop.f32.mrf.mxu0
    %v1232 = vadd.f32 %v1099, %v1231
    %v1233 = vpop.f32.mrf.mxu0
    %v1234 = vpop.f32.mrf.mxu0
    %v1235 = vpop.f32.mrf.mxu0
    %1236 = vdwg.mxu0
    %1237 = vst [vmem:[%s8] sm:$0x3] %v1232
    // Predicated region
    $region50: #{simple_rnn_forward.1} parent=1 // pred_check
      _
    $region51: #{simple_rnn_forward.1} parent=1 // pred_check_branch
      %1239 = sbr.rel (0) target = $region53
    $region52: #{simple_rnn_forward.1} parent=1 // pred_region
      _
    $region53: #{simple_rnn_forward.1} parent=1 // pred_fallthru
      _
    // Predicated region
    $region54: #{simple_rnn_forward.1} parent=1 // pred_check
      _
    $region55: #{simple_rnn_forward.1} parent=1 // pred_check_branch
      %1241 = sbr.rel (0) target = $region57
    $region56: #{simple_rnn_forward.1} parent=1 // pred_region
      _
    $region57: #{simple_rnn_forward.1} parent=1 // pred_fallthru
      _
    %1242 = vsyncpa [#allocation3], 1
    %1243 = vsyncpa [#allocation5], 1
    %1244 = vsyncpa [#allocation8], 1

</llo_original>
